<compile_context>
chip_gen: v7x
topology: tpu7x:2x2x1
jax: 0.10.0
libtpu: 0.0.40
codegen_flags: <defaults>
</compile_context>

<pallas_src>
import functools

import jax
import jax.numpy as jnp
from jax.experimental import pallas as pl
from jax.experimental.pallas import tpu as pltpu

LN_EPS = 1e-5  # PyTorch LayerNorm default


def _round_up(x, m):
    return (x + m - 1) // m * m


def _transition_kernel(x_ref, gamma_ref, beta_ref, w1a_ref, w1b_ref, w2_ref,
                       o_ref, *, c_real, ln_eps):
    # x_ref: (tm, C_pad) row tile; gamma/beta: (1, C_pad) f32;
    # w1a/w1b: (C_pad, H_pad) bf16; w2: (H_pad, C_pad) bf16 (fully resident).
    x = x_ref[...].astype(jnp.float32)

    # ---- LayerNorm over the real channel count (padded lanes are zero) ----
    inv_c = jnp.float32(1.0 / c_real)
    sum_x = jnp.sum(x, axis=-1, keepdims=True)
    sum_x2 = jnp.sum(x * x, axis=-1, keepdims=True)
    mean = sum_x * inv_c
    var = jnp.maximum(sum_x2 * inv_c - mean * mean, 0.0)
    xn = (x - mean) * jax.lax.rsqrt(var + ln_eps)
    # gamma/beta are zero in padded lanes -> xn is exactly 0 there.
    xn = xn * gamma_ref[...] + beta_ref[...]

    # ---- transition1 (no bias) with pre-split weights -> swish-GLU ----
    xn16 = xn.astype(jnp.bfloat16)
    a = jnp.dot(xn16, w1a_ref[...], preferred_element_type=jnp.float32)
    b = jnp.dot(xn16, w1b_ref[...], preferred_element_type=jnp.float32)
    # gated_linear_unit convention: silu(first half) * second half.
    c = (a * jax.nn.sigmoid(a)) * b

    # ---- transition2 (no bias) ----
    out = jnp.dot(c.astype(jnp.bfloat16), w2_ref[...],
                  preferred_element_type=jnp.float32)
    o_ref[...] = out.astype(o_ref.dtype)


@functools.partial(jax.jit, static_argnames=("tm", "ln_eps"))
def transition_pallas(x, gamma, beta, w1, w2, *, tm=256, ln_eps=LN_EPS):
    """x: (..., C).  w1: (C, 2*H)  (== transition1.weight.T),
    w2: (H, C)  (== transition2.weight.T).  Returns same shape/dtype as x."""
    orig_shape = x.shape
    C = orig_shape[-1]
    H = w1.shape[1] // 2
    x2d = x.reshape(-1, C)
    M = x2d.shape[0]

    # Lane-dense padding of channel / hidden axes; row padding to the tile.
    C_pad = _round_up(C, 128)
    H_pad = _round_up(H, 128)
    tm_eff = min(tm, _round_up(M, 8))
    M_pad = _round_up(M, tm_eff)

    x_p = jnp.pad(x2d, ((0, M_pad - M), (0, C_pad - C)))
    gamma_p = jnp.pad(gamma.astype(jnp.float32).reshape(1, C),
                      ((0, 0), (0, C_pad - C)))
    beta_p = jnp.pad(beta.astype(jnp.float32).reshape(1, C),
                     ((0, 0), (0, C_pad - C)))
    # Pre-split GLU weights and keep matmul operands in bf16 (halves VMEM/DMA).
    w1a = jnp.pad(w1[:, :H], ((0, C_pad - C), (0, H_pad - H))).astype(jnp.bfloat16)
    w1b = jnp.pad(w1[:, H:], ((0, C_pad - C), (0, H_pad - H))).astype(jnp.bfloat16)
    w2_p = jnp.pad(w2, ((0, H_pad - H), (0, C_pad - C))).astype(jnp.bfloat16)

    # Rough VMEM budget: resident bf16 weights + double-buffered x/out tiles
    # + f32 intermediates.  Raise the scoped limit above the 16/32 MiB default
    # but never above v7x's 64 MiB physical VMEM.
    itemsize = x.dtype.itemsize
    est = (6 * C_pad * H_pad                          # w1a + w1b + w2 (bf16)
           + 4 * tm_eff * C_pad * itemsize            # x/out tiles, double-buffered
           + 4 * tm_eff * (3 * H_pad + 3 * C_pad))    # f32 intermediates
    vmem_limit = int(min(max(2 * est, 32 * 1024 * 1024), 64 * 1024 * 1024))
    # TODO(synk): for very large C on v7x (64 MiB VMEM), tile the hidden axis H
    # with an extra "arbitrary" grid dim + f32 accumulator instead of keeping
    # the full weights resident.

    kernel = functools.partial(_transition_kernel,
                               c_real=float(C), ln_eps=float(ln_eps))

    out_p = pl.pallas_call(
        kernel,
        out_shape=jax.ShapeDtypeStruct((M_pad, C_pad), x.dtype),
        grid_spec=pltpu.PrefetchScalarGridSpec(
            num_scalar_prefetch=0,
            grid=(M_pad // tm_eff,),
            in_specs=[
                pl.BlockSpec((tm_eff, C_pad), lambda i: (i, 0)),   # x row tile
                pl.BlockSpec((1, C_pad), lambda i: (0, 0)),        # gamma
                pl.BlockSpec((1, C_pad), lambda i: (0, 0)),        # beta
                pl.BlockSpec((C_pad, H_pad), lambda i: (0, 0)),    # w1a (resident)
                pl.BlockSpec((C_pad, H_pad), lambda i: (0, 0)),    # w1b (resident)
                pl.BlockSpec((H_pad, C_pad), lambda i: (0, 0)),    # w2  (resident)
            ],
            out_specs=pl.BlockSpec((tm_eff, C_pad), lambda i: (i, 0)),
        ),
        compiler_params=pltpu.CompilerParams(
            dimension_semantics=("parallel",),
            vmem_limit_bytes=vmem_limit),
    )(x_p, gamma_p, beta_p, w1a, w1b, w2_p)

    return out_p[:M, :C].reshape(orig_shape)


def transition_reference_f32(x, gamma, beta, w1, w2, ln_eps=LN_EPS):
    """Pure-JAX f32 reference matching the PyTorch forward."""
    xf = x.astype(jnp.float32)
    mean = jnp.mean(xf, axis=-1, keepdims=True)
    var = jnp.mean((xf - mean) ** 2, axis=-1, keepdims=True)
    xn = (xf - mean) * jax.lax.rsqrt(var + ln_eps) * gamma + beta
    y = xn @ w1
    a, b = jnp.split(y, 2, axis=-1)
    c = jax.nn.silu(a) * b
    return (c @ w2).astype(x.dtype)


def transition_reference_bf16(x, gamma, beta, w1, w2, ln_eps=LN_EPS):
    """Reference matching the kernel's precision (bf16 matmul operands, f32 acc)."""
    xf = x.astype(jnp.float32)
    mean = jnp.mean(xf, axis=-1, keepdims=True)
    var = jnp.mean((xf - mean) ** 2, axis=-1, keepdims=True)
    xn = (xf - mean) * jax.lax.rsqrt(var + ln_eps) * gamma + beta
    H = w1.shape[1] // 2
    xn16 = xn.astype(jnp.bfloat16)
    a = jnp.dot(xn16, w1[:, :H].astype(jnp.bfloat16),
                preferred_element_type=jnp.float32)
    b = jnp.dot(xn16, w1[:, H:].astype(jnp.bfloat16),
                preferred_element_type=jnp.float32)
    c = jax.nn.silu(a) * b
    return jnp.dot(c.astype(jnp.bfloat16), w2.astype(jnp.bfloat16),
                   preferred_element_type=jnp.float32).astype(x.dtype)


if __name__ == "__main__":
    key = jax.random.PRNGKey(0)

    def make_params(k, C, factor=4):
        H = factor * C
        kg, kb, k1, k2 = jax.random.split(k, 4)
        gamma = 1.0 + 0.1 * jax.random.normal(kg, (C,), dtype=jnp.float32)
        beta = 0.1 * jax.random.normal(kb, (C,), dtype=jnp.float32)
        w1 = jax.random.normal(k1, (C, 2 * H), dtype=jnp.float32) / jnp.sqrt(C)
        w2 = jax.random.normal(k2, (H, C), dtype=jnp.float32) / jnp.sqrt(H)
        return gamma, beta, w1, w2

    # Case 1: small module-consistent shapes (batch=2, seq=8, c_x=32, factor=4).
    kx, kp, key = jax.random.split(key, 3)
    B, S, C = 2, 8, 32
    x = jax.random.normal(kx, (B, S, C), dtype=jnp.float32)
    gamma, beta, w1, w2 = make_params(kp, C)
    out = jax.block_until_ready(transition_pallas(x, gamma, beta, w1, w2))
    assert out.shape == x.shape and out.dtype == x.dtype
    ref_bf16 = transition_reference_bf16(x, gamma, beta, w1, w2)
    ref_f32 = transition_reference_f32(x, gamma, beta, w1, w2)
    assert jnp.allclose(out, ref_bf16, atol=1e-2, rtol=1e-2), "mismatch vs bf16-matched reference"
    assert jnp.allclose(out, ref_f32, atol=5e-2, rtol=5e-2), "mismatch vs f32 reference"

    # Case 2: row count not divisible by the tile (exercises row padding and a
    # multi-step pipelined grid).
    kx, kp, key = jax.random.split(key, 3)
    B, S, C = 2, 50, 32
    x = jax.random.normal(kx, (B, S, C), dtype=jnp.float32)
    gamma, beta, w1, w2 = make_params(kp, C)
    out = jax.block_until_ready(transition_pallas(x, gamma, beta, w1, w2, tm=32))
    ref_bf16 = transition_reference_bf16(x, gamma, beta, w1, w2)
    assert out.shape == x.shape and out.dtype == x.dtype
    assert jnp.allclose(out, ref_bf16, atol=1e-2, rtol=1e-2), "mismatch vs bf16-matched reference (case 2)"

    print("KERNEL_OK")
</pallas_src>

<mosaic_0001>
module attributes {stable_mosaic.version = 11 : i64} {
  func.func @_transition_kernel(%arg0: i32, %arg1: memref<16x128xf32, #tpu.memory_space<vmem>>, %arg2: memref<1x128xf32, #tpu.memory_space<vmem>>, %arg3: memref<1x128xf32, #tpu.memory_space<vmem>>, %arg4: memref<128x128xbf16, #tpu.memory_space<vmem>>, %arg5: memref<128x128xbf16, #tpu.memory_space<vmem>>, %arg6: memref<128x128xbf16, #tpu.memory_space<vmem>>, %arg7: memref<16x128xf32, #tpu.memory_space<vmem>>) attributes {dimension_semantics = [#tpu.dimension_semantics<parallel>], iteration_bounds = array<i64: 1>, scalar_prefetch = 0 : i64, scratch_operands = 0 : i64, tpu.core_type = #tpu.core_type<tc>, window_params = [{transform_indices = @transform_0, window_bounds = array<i64: 16, 128>}, {pipeline_mode = #tpu.pipeline_mode<synchronous>, transform_indices = @transform_1, window_bounds = array<i64: 1, 128>}, {pipeline_mode = #tpu.pipeline_mode<synchronous>, transform_indices = @transform_2, window_bounds = array<i64: 1, 128>}, {pipeline_mode = #tpu.pipeline_mode<synchronous>, transform_indices = @transform_3, window_bounds = array<i64: 128, 128>}, {pipeline_mode = #tpu.pipeline_mode<synchronous>, transform_indices = @transform_4, window_bounds = array<i64: 128, 128>}, {pipeline_mode = #tpu.pipeline_mode<synchronous>, transform_indices = @transform_5, window_bounds = array<i64: 128, 128>}, {transform_indices = @transform_6, window_bounds = array<i64: 16, 128>}]} {
    %c0 = arith.constant 0 : index
    %c0_0 = arith.constant 0 : index
    %0 = vector.load %arg1[%c0, %c0_0] : memref<16x128xf32, #tpu.memory_space<vmem>>, vector<16x128xf32>
    %cst = arith.constant dense<0.000000e+00> : vector<16xf32>
    %1 = vector.multi_reduction <add>, %0, %cst [1] : vector<16x128xf32> to vector<16xf32>
    %2 = vector.shape_cast %1 : vector<16xf32> to vector<16x1xf32>
    %3 = arith.mulf %0, %0 : vector<16x128xf32>
    %cst_1 = arith.constant dense<0.000000e+00> : vector<16xf32>
    %4 = vector.multi_reduction <add>, %3, %cst_1 [1] : vector<16x128xf32> to vector<16xf32>
    %5 = vector.shape_cast %4 : vector<16xf32> to vector<16x1xf32>
    %cst_2 = arith.constant 3.125000e-02 : f32
    %6 = vector.broadcast %cst_2 : f32 to vector<16x1xf32>
    %7 = arith.mulf %2, %6 : vector<16x1xf32>
    %cst_3 = arith.constant 3.125000e-02 : f32
    %8 = vector.broadcast %cst_3 : f32 to vector<16x1xf32>
    %9 = arith.mulf %5, %8 : vector<16x1xf32>
    %10 = arith.mulf %7, %7 : vector<16x1xf32>
    %11 = arith.subf %9, %10 : vector<16x1xf32>
    %cst_4 = arith.constant 0.000000e+00 : f32
    %12 = vector.broadcast %cst_4 : f32 to vector<16x1xf32>
    %13 = arith.maximumf %11, %12 : vector<16x1xf32>
    %14 = vector.broadcast %7 : vector<16x1xf32> to vector<16x128xf32>
    %15 = arith.subf %0, %14 : vector<16x128xf32>
    %cst_5 = arith.constant 9.99999974E-6 : f32
    %16 = vector.broadcast %cst_5 : f32 to vector<16x1xf32>
    %17 = arith.addf %13, %16 : vector<16x1xf32>
    %18 = math.rsqrt %17 : vector<16x1xf32>
    %19 = vector.broadcast %18 : vector<16x1xf32> to vector<16x128xf32>
    %20 = arith.mulf %15, %19 : vector<16x128xf32>
    %c0_6 = arith.constant 0 : index
    %c0_7 = arith.constant 0 : index
    %21 = vector.load %arg2[%c0_6, %c0_7] : memref<1x128xf32, #tpu.memory_space<vmem>>, vector<1x128xf32>
    %22 = vector.broadcast %21 : vector<1x128xf32> to vector<16x128xf32>
    %23 = arith.mulf %20, %22 : vector<16x128xf32>
    %c0_8 = arith.constant 0 : index
    %c0_9 = arith.constant 0 : index
    %24 = vector.load %arg3[%c0_8, %c0_9] : memref<1x128xf32, #tpu.memory_space<vmem>>, vector<1x128xf32>
    %25 = vector.broadcast %24 : vector<1x128xf32> to vector<16x128xf32>
    %26 = arith.addf %23, %25 : vector<16x128xf32>
    %27 = arith.truncf %26 : vector<16x128xf32> to vector<16x128xbf16>
    %c0_10 = arith.constant 0 : index
    %c0_11 = arith.constant 0 : index
    %28 = vector.load %arg4[%c0_10, %c0_11] : memref<128x128xbf16, #tpu.memory_space<vmem>>, vector<128x128xbf16>
    %cst_12 = arith.constant dense<0.000000e+00> : vector<16x128xf32>
    %29 = tpu.matmul %27, %28, %cst_12 {dimension_numbers = #tpu.dot_dimension_numbers<[1], [0], [0], [1], [0, 0, 1, 1], [], []>} : vector<16x128xbf16>, vector<128x128xbf16>, vector<16x128xf32> -> vector<16x128xf32>
    %c0_13 = arith.constant 0 : index
    %c0_14 = arith.constant 0 : index
    %30 = vector.load %arg5[%c0_13, %c0_14] : memref<128x128xbf16, #tpu.memory_space<vmem>>, vector<128x128xbf16>
    %cst_15 = arith.constant dense<0.000000e+00> : vector<16x128xf32>
    %31 = tpu.matmul %27, %30, %cst_15 {dimension_numbers = #tpu.dot_dimension_numbers<[1], [0], [0], [1], [0, 0, 1, 1], [], []>} : vector<16x128xbf16>, vector<128x128xbf16>, vector<16x128xf32> -> vector<16x128xf32>
    %32 = arith.negf %29 : vector<16x128xf32>
    %33 = math.exp %32 : vector<16x128xf32>
    %cst_16 = arith.constant 1.000000e+00 : f32
    %34 = vector.broadcast %cst_16 : f32 to vector<16x128xf32>
    %35 = arith.addf %34, %33 : vector<16x128xf32>
    %36 = arith.divf %34, %35 : vector<16x128xf32>
    %37 = arith.mulf %29, %36 : vector<16x128xf32>
    %38 = arith.mulf %37, %31 : vector<16x128xf32>
    %39 = arith.truncf %38 : vector<16x128xf32> to vector<16x128xbf16>
    %c0_17 = arith.constant 0 : index
    %c0_18 = arith.constant 0 : index
    %40 = vector.load %arg6[%c0_17, %c0_18] : memref<128x128xbf16, #tpu.memory_space<vmem>>, vector<128x128xbf16>
    %cst_19 = arith.constant dense<0.000000e+00> : vector<16x128xf32>
    %41 = tpu.matmul %39, %40, %cst_19 {dimension_numbers = #tpu.dot_dimension_numbers<[1], [0], [0], [1], [0, 0, 1, 1], [], []>} : vector<16x128xbf16>, vector<128x128xbf16>, vector<16x128xf32> -> vector<16x128xf32>
    %c0_20 = arith.constant 0 : index
    %c0_21 = arith.constant 0 : index
    %42 = vector.load %arg7[%c0_20, %c0_21] : memref<16x128xf32, #tpu.memory_space<vmem>>, vector<16x128xf32>
    tpu.vector_store %arg7[%c0_20, %c0_21], %41 {strides = array<i32>} : memref<16x128xf32, #tpu.memory_space<vmem>>, vector<16x128xf32>,
    return
  }
  func.func @transform_0(%arg0: i32) -> (i32, i32) {
    %c0_i32 = arith.constant 0 : i32
    %c0_i32_0 = arith.constant 0 : i32
    return %arg0, %c0_i32 : i32, i32
  }
  func.func @transform_1(%arg0: i32) -> (i32, i32) {
    %c0_i32 = arith.constant 0 : i32
    %c0_i32_0 = arith.constant 0 : i32
    %c0_i32_1 = arith.constant 0 : i32
    return %c0_i32, %c0_i32_0 : i32, i32
  }
  func.func @transform_2(%arg0: i32) -> (i32, i32) {
    %c0_i32 = arith.constant 0 : i32
    %c0_i32_0 = arith.constant 0 : i32
    %c0_i32_1 = arith.constant 0 : i32
    return %c0_i32, %c0_i32_0 : i32, i32
  }
  func.func @transform_3(%arg0: i32) -> (i32, i32) {
    %c0_i32 = arith.constant 0 : i32
    %c0_i32_0 = arith.constant 0 : i32
    %c0_i32_1 = arith.constant 0 : i32
    return %c0_i32, %c0_i32_0 : i32, i32
  }
  func.func @transform_4(%arg0: i32) -> (i32, i32) {
    %c0_i32 = arith.constant 0 : i32
    %c0_i32_0 = arith.constant 0 : i32
    %c0_i32_1 = arith.constant 0 : i32
    return %c0_i32, %c0_i32_0 : i32, i32
  }
  func.func @transform_5(%arg0: i32) -> (i32, i32) {
    %c0_i32 = arith.constant 0 : i32
    %c0_i32_0 = arith.constant 0 : i32
    %c0_i32_1 = arith.constant 0 : i32
    return %c0_i32, %c0_i32_0 : i32, i32
  }
  func.func @transform_6(%arg0: i32) -> (i32, i32) {
    %c0_i32 = arith.constant 0 : i32
    %c0_i32_0 = arith.constant 0 : i32
    return %arg0, %c0_i32 : i32, i32
  }
}

</mosaic_0001>

<llo_original>
// kernel: transition_pallas.1
$region0: #{transition_pallas.1}
  #allocation0 [shape = 'u32[]', space=smem, size = 0x4, offset = 0x4, fixed_abs, tag = 'smem constant byte address 0x4 - core index']
  #allocation1 [shape = 'u32[144,128]{1,0:T(1,128)}', space=vmem, size = 0x12000, scoped, tag = 'internal scratch']
  %s0 = inlined_call_operand.vmem [shape: f32[16,128], index: 0, kind: input, shape index: {}]
  %s1 = inlined_call_operand.vmem [shape: f32[1,128], index: 1, kind: input, shape index: {}]
  %s2 = inlined_call_operand.vmem [shape: f32[1,128], index: 2, kind: input, shape index: {}]
  %s3 = inlined_call_operand.vmem [shape: bf16[128,128], index: 3, kind: input, shape index: {}]
  %s4 = inlined_call_operand.vmem [shape: bf16[128,128], index: 4, kind: input, shape index: {}]
  %s5 = inlined_call_operand.vmem [shape: bf16[128,128], index: 5, kind: input, shape index: {}]
  %s6 = inlined_call_operand.vmem [shape: f32[16,128], index: 6, kind: output, shape index: {}]
  %s7 = sld [smem:[#allocation0]]
  $region34: #{transition_pallas.1} parent=0
    _
  %s9 = ssub.s32 1, %s7
  %s10 = scalar_select 0, %s9, %s7
  // Predicated region
  $region2: #{transition_pallas.1} parent=0 // pred_check
    _
  $region3: #{transition_pallas.1} parent=0 // pred_check_branch
    %12 = sbr.rel (0) target = $region5
  $region4: #{transition_pallas.1} parent=0 // pred_region
    _
  $region5: #{transition_pallas.1} parent=0 // pred_fallthru
    _
  // Predicated region
  $region6: #{transition_pallas.1} parent=0 // pred_check
    _
  $region7: #{transition_pallas.1} parent=0 // pred_check_branch
    %14 = sbr.rel (0) target = $region9
  $region8: #{transition_pallas.1} parent=0 // pred_region
    _
  $region9: #{transition_pallas.1} parent=0 // pred_fallthru
    _
  // Predicated region
  $region10: #{transition_pallas.1} parent=0 // pred_check
    _
  $region11: #{transition_pallas.1} parent=0 // pred_check_branch
    %16 = sbr.rel (0) target = $region13
  $region12: #{transition_pallas.1} parent=0 // pred_region
    _
  $region13: #{transition_pallas.1} parent=0 // pred_fallthru
    _
  // Predicated region
  $region14: #{transition_pallas.1} parent=0 // pred_check
    _
  $region15: #{transition_pallas.1} parent=0 // pred_check_branch
    %18 = sbr.rel (0) target = $region17
  $region16: #{transition_pallas.1} parent=0 // pred_region
    _
  $region17: #{transition_pallas.1} parent=0 // pred_fallthru
    _
  // Predicated region
  $region18: #{transition_pallas.1} parent=0 // pred_check
    _
  $region19: #{transition_pallas.1} parent=0 // pred_check_branch
    %20 = sbr.rel (0) target = $region21
  $region20: #{transition_pallas.1} parent=0 // pred_region
    _
  $region21: #{transition_pallas.1} parent=0 // pred_fallthru
    _
  // Predicated region
  $region22: #{transition_pallas.1} parent=0 // pred_check
    _
  $region23: #{transition_pallas.1} parent=0 // pred_check_branch
    %22 = sbr.rel (0) target = $region25
  $region24: #{transition_pallas.1} parent=0 // pred_region
    _
  $region25: #{transition_pallas.1} parent=0 // pred_fallthru
    _
  %v24 = vld [vmem:[%s0] sm:$0xff]
  %v25 = vld [vmem:[%s0 + $0x8] sm:$0xff]
  %26 = vadd.xlane.f32.xlu0 %v24
  %v27 = vpop.xlane.xlu0 %26
  %28 = vadd.xlane.f32.xlu0 %v25
  %v29 = vpop.xlane.xlu0 %28
  %v30 = vmul.f32 %v24, %v24
  %v31 = vmul.f32 %v25, %v25
  %32 = vadd.xlane.f32.xlu0 %v30
  %v33 = vpop.xlane.xlu0 %32
  %34 = vadd.xlane.f32.xlu0 %v31
  %v35 = vpop.xlane.xlu0 %34
  %v36 = vmul.f32 %v27, 0.03125
  %v37 = vmul.f32 %v29, 0.03125
  %v38 = vmul.f32 %v33, 0.03125
  %v39 = vmul.f32 %v35, 0.03125
  %v40 = vmul.f32 %v36, %v36
  %v41 = vmul.f32 %v37, %v37
  %v42 = vsub.f32 %v38, %v40
  %v43 = vsub.f32 %v39, %v41
  %v44 = vmax.f32 %v42, 0.0
  %v45 = vmax.f32 %v43, 0.0
  %v46 = vsub.f32 %v24, %v36
  %v47 = vsub.f32 %v25, %v37
  %v48 = vadd.f32 %v44, 1e-05
  %v49 = vadd.f32 %v45, 1e-05
  %v50 = vrsqrt.pop %v48
  %v51 = vrsqrt.pop %v49
  %v52 = vmul.f32 %v46, %v50
  %v53 = vmul.f32 %v47, %v51
  %v54 = vld [vmem:[%s1] sm:$0x1]
  %v56 = vlaneseq
  %v57 = vshrl.u32 %v56, 7
  %v58 = vsub.s32 0, %v57
  %v59 = vrot.slane %v54, %v58
  %v61 = vmul.f32 %v52, %v59
  %v62 = vmul.f32 %v53, %v59
  %v63 = vld [vmem:[%s2] sm:$0x1]
  %v65 = vlaneseq
  %v66 = vshrl.u32 %v65, 7
  %v67 = vsub.s32 0, %v66
  %v68 = vrot.slane %v63, %v67
  %v70 = vadd.f32 %v61, %v68
  %v71 = vadd.f32 %v62, %v68
  %v72 = vpack.c.bf16 %v71, %v70
  %v73 = vld [vmem:[%s3] sm:$0xf]
  %v74 = vld [vmem:[%s3 + $0x4] sm:$0xf]
  %v75 = vld [vmem:[%s3 + $0x8] sm:$0xf]
  %v76 = vld [vmem:[%s3 + $0xc] sm:$0xf]
  %v77 = vld [vmem:[%s3 + $0x10] sm:$0xf]
  %v78 = vld [vmem:[%s3 + $0x14] sm:$0xf]
  %v79 = vld [vmem:[%s3 + $0x18] sm:$0xf]
  %v80 = vld [vmem:[%s3 + $0x1c] sm:$0xf]
  %v81 = vld [vmem:[%s3 + $0x20] sm:$0xf]
  %v82 = vld [vmem:[%s3 + $0x24] sm:$0xf]
  %v83 = vld [vmem:[%s3 + $0x28] sm:$0xf]
  %v84 = vld [vmem:[%s3 + $0x2c] sm:$0xf]
  %v85 = vld [vmem:[%s3 + $0x30] sm:$0xf]
  %v86 = vld [vmem:[%s3 + $0x34] sm:$0xf]
  %v87 = vld [vmem:[%s3 + $0x38] sm:$0xf]
  %v88 = vld [vmem:[%s3 + $0x3c] sm:$0xf]
  %v105 = vunpack.c.l.b16 %v73
  %v106 = vunpack.c.l.b16 %v74
  %v107 = vunpack.c.l.b16 %v75
  %v108 = vunpack.c.l.b16 %v76
  %v109 = vunpack.c.l.b16 %v77
  %v110 = vunpack.c.l.b16 %v78
  %v111 = vunpack.c.l.b16 %v79
  %v112 = vunpack.c.l.b16 %v80
  %v113 = vunpack.c.l.b16 %v81
  %v114 = vunpack.c.l.b16 %v82
  %v115 = vunpack.c.l.b16 %v83
  %v116 = vunpack.c.l.b16 %v84
  %v117 = vunpack.c.l.b16 %v85
  %v118 = vunpack.c.l.b16 %v86
  %v119 = vunpack.c.l.b16 %v87
  %v120 = vunpack.c.l.b16 %v88
  %v121 = vpack.c.b16 %v106, %v105
  %v122 = vpack.c.b16 %v108, %v107
  %v123 = vpack.c.b16 %v110, %v109
  %v124 = vpack.c.b16 %v112, %v111
  %v125 = vpack.c.b16 %v114, %v113
  %v126 = vpack.c.b16 %v116, %v115
  %v127 = vpack.c.b16 %v118, %v117
  %v128 = vpack.c.b16 %v120, %v119
  %137 = vmatprep.subr.bf16.mxu0 0
  %138 = vmatpush1.bf16.msra.mxu0 %v121
  %139 = vmatprep.subr.bf16.mxu0 0
  %140 = vmatpush1.bf16.msra.mxu0 %v122
  %141 = vmatprep.subr.bf16.mxu0 0
  %142 = vmatpush1.bf16.msra.mxu0 %v123
  %143 = vmatprep.subr.bf16.mxu0 0
  %144 = vmatpush1.bf16.msra.mxu0 %v124
  %145 = vmatprep.subr.bf16.mxu0 0
  %146 = vmatpush1.bf16.msra.mxu0 %v125
  %147 = vmatprep.subr.bf16.mxu0 0
  %148 = vmatpush1.bf16.msra.mxu0 %v126
  %149 = vmatprep.subr.bf16.mxu0 0
  %150 = vmatpush1.bf16.msra.mxu0 %v127
  %151 = vmatprep.subr.bf16.mxu0 0
  %152 = vmatpush1.bf16.msra.mxu0 %v128
  %153 = vmatprep.subr.bf16.mxu0 0
  %154 = vmatpush1.bf16.msra.mxu0 0
  %155 = vmatprep.subr.bf16.mxu0 0
  %156 = vmatpush1.bf16.msra.mxu0 0
  %157 = vmatprep.subr.bf16.mxu0 0
  %158 = vmatpush1.bf16.msra.mxu0 0
  %159 = vmatprep.subr.bf16.mxu0 0
  %160 = vmatpush1.bf16.msra.mxu0 0
  %161 = vmatprep.subr.bf16.mxu0 0
  %162 = vmatpush1.bf16.msra.mxu0 0
  %163 = vmatprep.subr.bf16.mxu0 0
  %164 = vmatpush1.bf16.msra.mxu0 0
  %165 = vmatprep.subr.bf16.mxu0 0
  %166 = vmatpush1.bf16.msra.mxu0 0
  %167 = vmatprep.subr.bf16.mxu0 0
  %168 = vmatpush1.bf16.msra.mxu0 0
  %169 = vmatprep.mubr.bf16.mxu0 0
  %170 = vmatmul.mubr.bf16.gmra.mrb[0].mxu0 %v72
  %v171 = vpop.f32.mrb[0].mxu0
  %v172 = vadd.f32 0.0, %v171
  %v173 = vpop.f32.mrb[0].mxu0
  %v174 = vpop.f32.mrb[0].mxu0
  %v175 = vadd.f32 0.0, %v174
  %v176 = vpop.f32.mrb[0].mxu0
  %177 = vdwg.mxu0
  %v178 = vld [vmem:[%s4] sm:$0xf]
  %v179 = vld [vmem:[%s4 + $0x4] sm:$0xf]
  %v180 = vld [vmem:[%s4 + $0x8] sm:$0xf]
  %v181 = vld [vmem:[%s4 + $0xc] sm:$0xf]
  %v182 = vld [vmem:[%s4 + $0x10] sm:$0xf]
  %v183 = vld [vmem:[%s4 + $0x14] sm:$0xf]
  %v184 = vld [vmem:[%s4 + $0x18] sm:$0xf]
  %v185 = vld [vmem:[%s4 + $0x1c] sm:$0xf]
  %v186 = vld [vmem:[%s4 + $0x20] sm:$0xf]
  %v187 = vld [vmem:[%s4 + $0x24] sm:$0xf]
  %v188 = vld [vmem:[%s4 + $0x28] sm:$0xf]
  %v189 = vld [vmem:[%s4 + $0x2c] sm:$0xf]
  %v190 = vld [vmem:[%s4 + $0x30] sm:$0xf]
  %v191 = vld [vmem:[%s4 + $0x34] sm:$0xf]
  %v192 = vld [vmem:[%s4 + $0x38] sm:$0xf]
  %v193 = vld [vmem:[%s4 + $0x3c] sm:$0xf]
  %v210 = vunpack.c.l.b16 %v178
  %v211 = vunpack.c.l.b16 %v179
  %v212 = vunpack.c.l.b16 %v180
  %v213 = vunpack.c.l.b16 %v181
  %v214 = vunpack.c.l.b16 %v182
  %v215 = vunpack.c.l.b16 %v183
  %v216 = vunpack.c.l.b16 %v184
  %v217 = vunpack.c.l.b16 %v185
  %v218 = vunpack.c.l.b16 %v186
  %v219 = vunpack.c.l.b16 %v187
  %v220 = vunpack.c.l.b16 %v188
  %v221 = vunpack.c.l.b16 %v189
  %v222 = vunpack.c.l.b16 %v190
  %v223 = vunpack.c.l.b16 %v191
  %v224 = vunpack.c.l.b16 %v192
  %v225 = vunpack.c.l.b16 %v193
  %v226 = vpack.c.b16 %v211, %v210
  %v227 = vpack.c.b16 %v213, %v212
  %v228 = vpack.c.b16 %v215, %v214
  %v229 = vpack.c.b16 %v217, %v216
  %v230 = vpack.c.b16 %v219, %v218
  %v231 = vpack.c.b16 %v221, %v220
  %v232 = vpack.c.b16 %v223, %v222
  %v233 = vpack.c.b16 %v225, %v224
  %242 = vmatprep.subr.bf16.mxu0 0
  %243 = vmatpush1.bf16.msra.mxu0 %v226
  %244 = vmatprep.subr.bf16.mxu0 0
  %245 = vmatpush1.bf16.msra.mxu0 %v227
  %246 = vmatprep.subr.bf16.mxu0 0
  %247 = vmatpush1.bf16.msra.mxu0 %v228
  %248 = vmatprep.subr.bf16.mxu0 0
  %249 = vmatpush1.bf16.msra.mxu0 %v229
  %250 = vmatprep.subr.bf16.mxu0 0
  %251 = vmatpush1.bf16.msra.mxu0 %v230
  %252 = vmatprep.subr.bf16.mxu0 0
  %253 = vmatpush1.bf16.msra.mxu0 %v231
  %254 = vmatprep.subr.bf16.mxu0 0
  %255 = vmatpush1.bf16.msra.mxu0 %v232
  %256 = vmatprep.subr.bf16.mxu0 0
  %257 = vmatpush1.bf16.msra.mxu0 %v233
  %258 = vmatprep.subr.bf16.mxu0 0
  %259 = vmatpush1.bf16.msra.mxu0 0
  %260 = vmatprep.subr.bf16.mxu0 0
  %261 = vmatpush1.bf16.msra.mxu0 0
  %262 = vmatprep.subr.bf16.mxu0 0
  %263 = vmatpush1.bf16.msra.mxu0 0
  %264 = vmatprep.subr.bf16.mxu0 0
  %265 = vmatpush1.bf16.msra.mxu0 0
  %266 = vmatprep.subr.bf16.mxu0 0
  %267 = vmatpush1.bf16.msra.mxu0 0
  %268 = vmatprep.subr.bf16.mxu0 0
  %269 = vmatpush1.bf16.msra.mxu0 0
  %270 = vmatprep.subr.bf16.mxu0 0
  %271 = vmatpush1.bf16.msra.mxu0 0
  %272 = vmatprep.subr.bf16.mxu0 0
  %273 = vmatpush1.bf16.msra.mxu0 0
  %274 = vmatprep.mubr.bf16.mxu0 0
  %275 = vmatmul.mubr.bf16.gmra.mrb[0].mxu0 %v72
  %v276 = vpop.f32.mrb[0].mxu0
  %v277 = vadd.f32 0.0, %v276
  %v278 = vpop.f32.mrb[0].mxu0
  %v279 = vpop.f32.mrb[0].mxu0
  %v280 = vadd.f32 0.0, %v279
  %v281 = vpop.f32.mrb[0].mxu0
  %282 = vdwg.mxu0
  %v283 = vxor.u32 %v172, 2147483648
  %v284 = vxor.u32 %v175, 2147483648
  %v285 = vmul.f32 %v283, 1.442695
  %v286 = vpow.pop %v285
  %v287 = vmul.f32 %v284, 1.442695
  %v288 = vpow.pop %v287
  %v289 = vadd.f32 %v286, 1.0
  %v290 = vadd.f32 %v288, 1.0
  %v291 = vrcp.pop %v289
  %v292 = vmul.f32 1.0, %v291
  %v293 = vrcp.pop %v290
  %v294 = vmul.f32 1.0, %v293
  %v295 = vmul.f32 %v172, %v292
  %v296 = vmul.f32 %v175, %v294
  %v297 = vmul.f32 %v295, %v277
  %v298 = vmul.f32 %v296, %v280
  %v299 = vpack.c.bf16 %v298, %v297
  %v300 = vld [vmem:[%s5] sm:$0xf]
  %v301 = vld [vmem:[%s5 + $0x4] sm:$0xf]
  %v302 = vld [vmem:[%s5 + $0x8] sm:$0xf]
  %v303 = vld [vmem:[%s5 + $0xc] sm:$0xf]
  %v304 = vld [vmem:[%s5 + $0x10] sm:$0xf]
  %v305 = vld [vmem:[%s5 + $0x14] sm:$0xf]
  %v306 = vld [vmem:[%s5 + $0x18] sm:$0xf]
  %v307 = vld [vmem:[%s5 + $0x1c] sm:$0xf]
  %v308 = vld [vmem:[%s5 + $0x20] sm:$0xf]
  %v309 = vld [vmem:[%s5 + $0x24] sm:$0xf]
  %v310 = vld [vmem:[%s5 + $0x28] sm:$0xf]
  %v311 = vld [vmem:[%s5 + $0x2c] sm:$0xf]
  %v312 = vld [vmem:[%s5 + $0x30] sm:$0xf]
  %v313 = vld [vmem:[%s5 + $0x34] sm:$0xf]
  %v314 = vld [vmem:[%s5 + $0x38] sm:$0xf]
  %v315 = vld [vmem:[%s5 + $0x3c] sm:$0xf]
  %v332 = vunpack.c.l.b16 %v300
  %v333 = vunpack.c.l.b16 %v301
  %v334 = vunpack.c.l.b16 %v302
  %v335 = vunpack.c.l.b16 %v303
  %v336 = vunpack.c.l.b16 %v304
  %v337 = vunpack.c.l.b16 %v305
  %v338 = vunpack.c.l.b16 %v306
  %v339 = vunpack.c.l.b16 %v307
  %v340 = vunpack.c.l.b16 %v308
  %v341 = vunpack.c.l.b16 %v309
  %v342 = vunpack.c.l.b16 %v310
  %v343 = vunpack.c.l.b16 %v311
  %v344 = vunpack.c.l.b16 %v312
  %v345 = vunpack.c.l.b16 %v313
  %v346 = vunpack.c.l.b16 %v314
  %v347 = vunpack.c.l.b16 %v315
  %v348 = vpack.c.b16 %v333, %v332
  %v349 = vpack.c.b16 %v335, %v334
  %v350 = vpack.c.b16 %v337, %v336
  %v351 = vpack.c.b16 %v339, %v338
  %v352 = vpack.c.b16 %v341, %v340
  %v353 = vpack.c.b16 %v343, %v342
  %v354 = vpack.c.b16 %v345, %v344
  %v355 = vpack.c.b16 %v347, %v346
  %364 = vmatprep.subr.bf16.mxu0 0
  %365 = vmatpush1.bf16.msra.mxu0 %v348
  %366 = vmatprep.subr.bf16.mxu0 0
  %367 = vmatpush1.bf16.msra.mxu0 %v349
  %368 = vmatprep.subr.bf16.mxu0 0
  %369 = vmatpush1.bf16.msra.mxu0 %v350
  %370 = vmatprep.subr.bf16.mxu0 0
  %371 = vmatpush1.bf16.msra.mxu0 %v351
  %372 = vmatprep.subr.bf16.mxu0 0
  %373 = vmatpush1.bf16.msra.mxu0 %v352
  %374 = vmatprep.subr.bf16.mxu0 0
  %375 = vmatpush1.bf16.msra.mxu0 %v353
  %376 = vmatprep.subr.bf16.mxu0 0
  %377 = vmatpush1.bf16.msra.mxu0 %v354
  %378 = vmatprep.subr.bf16.mxu0 0
  %379 = vmatpush1.bf16.msra.mxu0 %v355
  %380 = vmatprep.subr.bf16.mxu0 0
  %381 = vmatpush1.bf16.msra.mxu0 0
  %382 = vmatprep.subr.bf16.mxu0 0
  %383 = vmatpush1.bf16.msra.mxu0 0
  %384 = vmatprep.subr.bf16.mxu0 0
  %385 = vmatpush1.bf16.msra.mxu0 0
  %386 = vmatprep.subr.bf16.mxu0 0
  %387 = vmatpush1.bf16.msra.mxu0 0
  %388 = vmatprep.subr.bf16.mxu0 0
  %389 = vmatpush1.bf16.msra.mxu0 0
  %390 = vmatprep.subr.bf16.mxu0 0
  %391 = vmatpush1.bf16.msra.mxu0 0
  %392 = vmatprep.subr.bf16.mxu0 0
  %393 = vmatpush1.bf16.msra.mxu0 0
  %394 = vmatprep.subr.bf16.mxu0 0
  %395 = vmatpush1.bf16.msra.mxu0 0
  %396 = vmatprep.mubr.bf16.mxu0 0
  %397 = vmatmul.mubr.bf16.gmra.mrb[0].mxu0 %v299
  %v398 = vpop.f32.mrb[0].mxu0
  %v399 = vadd.f32 0.0, %v398
  %v400 = vpop.f32.mrb[0].mxu0
  %v401 = vpop.f32.mrb[0].mxu0
  %v402 = vadd.f32 0.0, %v401
  %v403 = vpop.f32.mrb[0].mxu0
  %404 = vdwg.mxu0
  %405 = vst [vmem:[%s6] sm:$0xff] %v399
  %406 = vst [vmem:[%s6 + $0x8] sm:$0xff] %v402
  // Predicated region
  $region26: #{transition_pallas.1} parent=0 // pred_check
    _
  $region27: #{transition_pallas.1} parent=0 // pred_check_branch
    %408 = sbr.rel (0) target = $region29
  $region28: #{transition_pallas.1} parent=0 // pred_region
    _
  $region29: #{transition_pallas.1} parent=0 // pred_fallthru
    _
  // Predicated region
  $region30: #{transition_pallas.1} parent=0 // pred_check
    _
  $region31: #{transition_pallas.1} parent=0 // pred_check_branch
    %410 = sbr.rel (0) target = $region33
  $region32: #{transition_pallas.1} parent=0 // pred_region
    _
  $region33: #{transition_pallas.1} parent=0 // pred_fallthru
    _

</llo_original>
